<compile_context>
chip_gen: v7x
topology: tpu7x:2x2x1
jax: 0.10.0
libtpu: 0.0.40
codegen_flags: <defaults>
</compile_context>

<pallas_src>
import math
from functools import partial

import jax
import jax.numpy as jnp
from jax import lax
from jax.experimental import pallas as pl
from jax.experimental.pallas import tpu as pltpu


# --------------------------------------------------------------------------- #
# Kernel
# --------------------------------------------------------------------------- #
def _make_kernel(C, gm, ng):
    """ng merged-column groups of gm merged columns each; lane layout inside a group
    slice is (original column, channel) with 2*gm original columns of C lanes."""
    gC = gm * C          # packed output lanes per group
    g2C = 2 * gC         # input lanes per group (2 original columns per merged column)

    def kernel(xe_ref, xo_ref, we_ref, wo_ref, m_ref, gam_ref, bet_ref, out_ref):
        we = we_ref[...]                 # (2*gm*C, gm*C) kron(I_gm, w_half_even)
        wo = wo_ref[...]                 # (2*gm*C, gm*C) kron(I_gm, w_half_odd)
        m = m_ref[...]                   # (gm*C, gm*C)   block-diag segment-mean matrix
        gam = gam_ref[...]               # (1, gm*C)      0.5*gamma (tiled), f32
        bet = bet_ref[...]               # (1, gm*C)      0.5*beta  (tiled), f32
        cdt = we.dtype                   # MXU feed dtype (bf16 fast path / f32 exact path)

        for g in range(ng):              # static unroll; ng is small (<= W2)
            xe_s = xe_ref[:, g * g2C:(g + 1) * g2C]
            xo_s = xo_ref[:, g * g2C:(g + 1) * g2C]

            # 4C -> C reduction for gm merged columns at once (two MXU pushes, f32 acc)
            y = jnp.dot(xe_s.astype(cdt), we, preferred_element_type=jnp.float32)
            y = y + jnp.dot(xo_s.astype(cdt), wo, preferred_element_type=jnp.float32)

            # LayerNorm stats: two independent pushes, var = E[y^2] - mu^2 (f32; the
            # clamp guards the tiny negatives rounding can produce).
            mu = jnp.dot(y.astype(cdt), m, preferred_element_type=jnp.float32)
            e2 = jnp.dot((y * y).astype(cdt), m, preferred_element_type=jnp.float32)
            var = jnp.maximum(e2 - mu * mu, 0.0)
            yhat = (y - mu) * lax.rsqrt(var + 1e-5)     # torch LayerNorm default eps

            # 2x2 area residual stays off the MXU: sum parities on the VPU, then pair
            # adjacent C-wide column blocks with static lane slices.
            s = xe_s.astype(jnp.float32) + xo_s.astype(jnp.float32)
            pieces = [s[:, (2 * p) * C:(2 * p + 1) * C] +
                      s[:, (2 * p + 1) * C:(2 * p + 2) * C] for p in range(gm)]
            res = pieces[0] if gm == 1 else jnp.concatenate(pieces, axis=-1)

            # out = 0.5 * LayerNorm(y) + 0.5 * (2x2 mean); 0.5s folded into gam/bet/0.125
            out = yhat * gam + bet + 0.125 * res
            out_ref[:, g * gC:(g + 1) * gC] = out.astype(out_ref.dtype)

    return kernel


# --------------------------------------------------------------------------- #
# Host-side helpers (all hoisted / cached — not re-run per forward call)
# --------------------------------------------------------------------------- #
def _choose_gm(C, W2):
    """Smallest merged-column group size gm with gm*C a multiple of 128 (clean lane
    slices) that also divides W2.  Large C (compute-bound regime) -> gm = 1..2, so
    the kron blowup vanishes exactly where MXU FLOPs matter."""
    aligned = max(1, 128 // math.gcd(C, 128))
    return max(1, math.gcd(aligned, W2))


def _vmem_cap_bytes():
    try:
        info = pltpu.get_tpu_info()
        cap = getattr(info, "vmem_capacity_bytes", None)
        if cap:
            return int(cap)
    except Exception:
        pass
    return 64 * 1024 * 1024   # conservative (v7x physical VMEM)


def _pick_tile_r(R, row_bytes, sub, target_bytes, min_steps=4):
    """Rows (of the flattened B*H/2 axis) per grid step: as large as the VMEM budget
    allows, a multiple of the dtype's sublane pack, an exact divisor of R, while
    keeping enough steps for the DMA pipeline and (on v7x) both TensorCores."""
    if R % sub != 0:
        # TODO(synk): pad B*H/2 to a sublane-pack multiple instead of one big block.
        return R
    budget = max(sub, (target_bytes // max(row_bytes, 1)) // sub * sub)
    divisors = [d for d in range(sub, R + 1, sub) if R % d == 0]
    for want in (min_steps, 2):
        good = [d for d in divisors if d <= budget and R // d >= want]
        if good:
            return good[-1]
    fit = [d for d in divisors if d <= budget]
    return fit[-1] if fit else divisors[0]


def _build_constants(w_red, gamma, beta, gm, mxu_dtype):
    """Structured fused weights (built once).  Input lane within a column pair is
    dw*C + c_in; torch feature index is k = 4*c_in + 2*dh + dw."""
    C = w_red.shape[0]
    wt = jnp.asarray(w_red, jnp.float32).T                    # (4C, C)
    r = jnp.arange(2 * C)
    c_in, dw = r % C, r // C
    eye = jnp.eye(gm, dtype=jnp.float32)
    w_e = jnp.kron(eye, wt[4 * c_in + dw, :]).astype(mxu_dtype)          # dh = 0
    w_o = jnp.kron(eye, wt[4 * c_in + 2 + dw, :]).astype(mxu_dtype)      # dh = 1
    m = jnp.kron(eye, jnp.full((C, C), 1.0 / C, jnp.float32)).astype(mxu_dtype)
    g_p = (0.5 * jnp.tile(jnp.asarray(gamma, jnp.float32), gm)).reshape(1, gm * C)
    b_p = (0.5 * jnp.tile(jnp.asarray(beta, jnp.float32), gm)).reshape(1, gm * C)
    return w_e, w_o, m, g_p, b_p


# --------------------------------------------------------------------------- #
# pallas_call wrapper
# --------------------------------------------------------------------------- #
def _forward(x, consts, gm):
    we, wo, m, g_p, b_p = consts
    B, H, W, C = x.shape
    H2, W2 = H // 2, W // 2
    R, WC, gC = B * H2, W * C, gm * C
    ng = W2 // gm

    in_isz = jnp.dtype(x.dtype).itemsize
    mxu_isz = jnp.dtype(we.dtype).itemsize

    # free, metadata-only reshape of the contiguous (B,H,W,C) layout:
    # row r = (b, i); lanes [0,WC) = source row 2i, lanes [WC,2WC) = source row 2i+1
    xr = x.reshape(R, 2 * WC)

    sub = 8 if in_isz >= 4 else (16 if in_isz == 2 else 32)   # sublane pack per dtype
    cap = _vmem_cap_bytes()
    target = min(8 << 20, cap // 12)          # big tiles on 128 MiB parts, tighter on v7x
    row_bytes = 2 * 2 * WC * in_isz + 2 * W2 * C * in_isz + 16 * gC * 4
    tile_r = _pick_tile_r(R, row_bytes, sub, target)

    # VMEM: double-buffered activation stripes + single-buffered structured constants
    # + f32 in-kernel intermediates (y, mu, e2, var, yhat, s, res, casts) w/ headroom.
    est = (2 * 2 * tile_r * WC * in_isz
           + 2 * tile_r * W2 * C * in_isz
           + (2 * (2 * gC) * gC + gC * gC) * mxu_isz + 4 * gC * 4
           + 20 * gC * tile_r * 4)
    vmem_limit = int(min(max(32 << 20, 2 * est), (cap * 3) // 4))

    def _const_spec(shape):
        try:   # single-buffer the grid-invariant operands
            return pl.BlockSpec(shape, lambda t: (0, 0), pipeline_mode=pl.Buffered(1))
        except TypeError:
            return pl.BlockSpec(shape, lambda t: (0, 0))

    out = pl.pallas_call(
        _make_kernel(C, gm, ng),
        out_shape=jax.ShapeDtypeStruct((R, W2 * C), x.dtype),
        grid_spec=pltpu.PrefetchScalarGridSpec(
            num_scalar_prefetch=0,
            grid=(R // tile_r,),
            in_specs=[
                pl.BlockSpec((tile_r, WC), lambda t: (t, 0)),   # even source rows
                pl.BlockSpec((tile_r, WC), lambda t: (t, 1)),   # odd source rows
                _const_spec(we.shape),
                _const_spec(wo.shape),
                _const_spec(m.shape),
                _const_spec(g_p.shape),
                _const_spec(b_p.shape),
            ],
            out_specs=pl.BlockSpec((tile_r, W2 * C), lambda t: (t, 0)),
        ),
        compiler_params=pltpu.CompilerParams(
            dimension_semantics=("parallel",),
            vmem_limit_bytes=vmem_limit),
    )(xr, xr, we, wo, m, g_p, b_p)

    # free reshape back to the module's (B, L, C) layout
    return out.reshape(B, H2 * W2, C)


def make_patch_merging(w_red, gamma, beta, *, mxu_dtype=jnp.bfloat16):
    """Build a PatchMerging forward(x) with all fused constants prepared ONCE
    (hoisted out of the per-call path) and cached per column-group size.

    w_red : (C, 4C)  nn.Linear(4*dim, dim, bias=False) weight, torch layout
    gamma : (C,)     LayerNorm weight;  beta : (C,) LayerNorm bias
    mxu_dtype : dtype fed to the MXU (bf16 fast path by default; f32 for exactness)
    """
    w_red = jnp.asarray(w_red)
    gamma = jnp.asarray(gamma)
    beta = jnp.asarray(beta)
    C = int(w_red.shape[0])
    assert w_red.shape == (C, 4 * C) and gamma.shape == (C,) and beta.shape == (C,)
    mxu_dtype = jnp.dtype(mxu_dtype)
    cache = {}

    def _consts(gm):
        if gm not in cache:
            cache[gm] = _build_constants(w_red, gamma, beta, gm, mxu_dtype)
        return cache[gm]

    run = jax.jit(_forward, static_argnums=(2,))

    def forward(x):
        B, H, W, Cx = x.shape
        assert Cx == C, "channel mismatch with the prepared weights"
        assert H % 2 == 0 and W % 2 == 0, "PatchMerging needs even spatial dims"
        assert (W * C) % 128 == 0, "lane-dense fast path needs W*C % 128 == 0"
        # TODO(synk): add a lane-padding fallback for exotic widths; all standard Swin
        # merge stages (56x56/C=96, 28x28/C=192, 14x14/C=384) satisfy W*C % 128 == 0.
        gm = _choose_gm(C, W // 2)
        return run(x, _consts(gm), gm)

    return forward


def patch_merging(x, w_red, gamma, beta, *, mxu_dtype=jnp.bfloat16):
    """One-shot convenience wrapper (prefer make_patch_merging for repeated calls)."""
    return make_patch_merging(w_red, gamma, beta, mxu_dtype=mxu_dtype)(x)


# --------------------------------------------------------------------------- #
# Pure-JAX reference mirroring the PyTorch forward
# --------------------------------------------------------------------------- #
def _reference(x, w_red, gamma, beta):
    B, H, W, C = x.shape
    res = x.reshape(B, H // 2, 2, W // 2, 2, C).mean(axis=(2, 4)).reshape(B, -1, C)
    xm = x.reshape(B, H // 2, 2, W // 2, 2, C)
    xm = jnp.transpose(xm, (0, 1, 3, 5, 2, 4)).reshape(B, -1, 4 * C)
    y = xm @ w_red.T
    mu = y.mean(-1, keepdims=True)
    var = ((y - mu) ** 2).mean(-1, keepdims=True)
    yn = (y - mu) / jnp.sqrt(var + 1e-5) * gamma + beta
    return 0.5 * yn + 0.5 * res


# --------------------------------------------------------------------------- #
# Demo / correctness checks
# --------------------------------------------------------------------------- #
if __name__ == "__main__":
    B, H, W, C = 2, 16, 16, 32          # dim = 32
    key = jax.random.PRNGKey(0)
    kx, kw, kg, kb = jax.random.split(key, 4)
    x = jax.random.normal(kx, (B, H, W, C), dtype=jnp.float32)

    # (1) the module's deterministic initialize_weights(): row i of the (C, 4C)
    #     reduction weight is 0.25 over torch-features [4i, 4i+4); LN affine = 1/0.
    rows = jnp.arange(C)
    cols = jnp.arange(4 * C)
    w_init = jnp.where((cols[None, :] // 4) == rows[:, None], 0.25, 0.0).astype(jnp.float32)
    g_init = jnp.ones((C,), jnp.float32)
    b_init = jnp.zeros((C,), jnp.float32)

    # (2) random ("trained") parameters — the symmetric init would hide permutation bugs.
    w_rand = jax.random.normal(kw, (C, 4 * C), jnp.float32) / jnp.sqrt(4.0 * C)
    g_rand = 1.0 + 0.1 * jax.random.normal(kg, (C,), jnp.float32)
    b_rand = 0.05 * jax.random.normal(kb, (C,), jnp.float32)

    # Exact path (f32 MXU feed): must match the f32 reference tightly.
    for (w_red, gamma, beta) in [(w_init, g_init, b_init), (w_rand, g_rand, b_rand)]:
        fwd = make_patch_merging(w_red, gamma, beta, mxu_dtype=jnp.float32)
        out = jax.block_until_ready(fwd(x))
        ref = _reference(x, w_red, gamma, beta)
        assert out.shape == (B, (H // 2) * (W // 2), C)
        assert jnp.allclose(out, ref, atol=1e-4, rtol=1e-4), \
            float(jnp.max(jnp.abs(out - ref)))

    # Fast path (default bf16 MXU feed), f32 activations: looser tolerance.
    fwd_fast = make_patch_merging(w_rand, g_rand, b_rand)
    out = jax.block_until_ready(fwd_fast(x))
    ref = _reference(x, w_rand, g_rand, b_rand)
    assert jnp.allclose(out, ref, atol=5e-2, rtol=5e-2), \
        float(jnp.max(jnp.abs(out - ref)))

    # bf16 activations end-to-end (bf16-specific test requested by the review).
    out_bf16 = jax.block_until_ready(fwd_fast(x.astype(jnp.bfloat16)))
    assert jnp.allclose(out_bf16.astype(jnp.float32), ref, atol=7.5e-2, rtol=7.5e-2), \
        float(jnp.max(jnp.abs(out_bf16.astype(jnp.float32) - ref)))

    print("KERNEL_OK")
</pallas_src>

<mosaic_0001>
module attributes {stable_mosaic.version = 11 : i64} {
  func.func @kernel(%arg0: i32, %arg1: memref<8x512xf32, #tpu.memory_space<vmem>>, %arg2: memref<8x512xf32, #tpu.memory_space<vmem>>, %arg3: memref<256x128xf32, #tpu.memory_space<vmem>>, %arg4: memref<256x128xf32, #tpu.memory_space<vmem>>, %arg5: memref<128x128xf32, #tpu.memory_space<vmem>>, %arg6: memref<1x128xf32, #tpu.memory_space<vmem>>, %arg7: memref<1x128xf32, #tpu.memory_space<vmem>>, %arg8: memref<8x256xf32, #tpu.memory_space<vmem>>) attributes {dimension_semantics = [#tpu.dimension_semantics<parallel>], iteration_bounds = array<i64: 2>, scalar_prefetch = 0 : i64, scratch_operands = 0 : i64, tpu.core_type = #tpu.core_type<tc>, window_params = [{transform_indices = @transform_0, window_bounds = array<i64: 8, 512>}, {transform_indices = @transform_1, window_bounds = array<i64: 8, 512>}, {pipeline_mode = #tpu.pipeline_mode<synchronous>, transform_indices = @transform_2, window_bounds = array<i64: 256, 128>}, {pipeline_mode = #tpu.pipeline_mode<synchronous>, transform_indices = @transform_3, window_bounds = array<i64: 256, 128>}, {pipeline_mode = #tpu.pipeline_mode<synchronous>, transform_indices = @transform_4, window_bounds = array<i64: 128, 128>}, {pipeline_mode = #tpu.pipeline_mode<synchronous>, transform_indices = @transform_5, window_bounds = array<i64: 1, 128>}, {pipeline_mode = #tpu.pipeline_mode<synchronous>, transform_indices = @transform_6, window_bounds = array<i64: 1, 128>}, {transform_indices = @transform_7, window_bounds = array<i64: 8, 256>}]} {
    %c0 = arith.constant 0 : index
    %c0_0 = arith.constant 0 : index
    %0 = vector.load %arg3[%c0, %c0_0] : memref<256x128xf32, #tpu.memory_space<vmem>>, vector<256x128xf32>
    %c0_1 = arith.constant 0 : index
    %c0_2 = arith.constant 0 : index
    %1 = vector.load %arg4[%c0_1, %c0_2] : memref<256x128xf32, #tpu.memory_space<vmem>>, vector<256x128xf32>
    %c0_3 = arith.constant 0 : index
    %c0_4 = arith.constant 0 : index
    %2 = vector.load %arg5[%c0_3, %c0_4] : memref<128x128xf32, #tpu.memory_space<vmem>>, vector<128x128xf32>
    %c0_5 = arith.constant 0 : index
    %c0_6 = arith.constant 0 : index
    %3 = vector.load %arg6[%c0_5, %c0_6] : memref<1x128xf32, #tpu.memory_space<vmem>>, vector<1x128xf32>
    %c0_7 = arith.constant 0 : index
    %c0_8 = arith.constant 0 : index
    %4 = vector.load %arg7[%c0_7, %c0_8] : memref<1x128xf32, #tpu.memory_space<vmem>>, vector<1x128xf32>
    %c0_9 = arith.constant 0 : index
    %c0_10 = arith.constant 0 : index
    %5 = vector.load %arg1[%c0_9, %c0_10] : memref<8x512xf32, #tpu.memory_space<vmem>>, vector<8x256xf32>
    %c0_11 = arith.constant 0 : index
    %c0_12 = arith.constant 0 : index
    %6 = vector.load %arg2[%c0_11, %c0_12] : memref<8x512xf32, #tpu.memory_space<vmem>>, vector<8x256xf32>
    %cst = arith.constant dense<0.000000e+00> : vector<8x128xf32>
    %7 = tpu.matmul %5, %0, %cst {dimension_numbers = #tpu.dot_dimension_numbers<[1], [0], [0], [1], [0, 0, 1, 1], [], []>} : vector<8x256xf32>, vector<256x128xf32>, vector<8x128xf32> -> vector<8x128xf32>
    %cst_13 = arith.constant dense<0.000000e+00> : vector<8x128xf32>
    %8 = tpu.matmul %6, %1, %cst_13 {dimension_numbers = #tpu.dot_dimension_numbers<[1], [0], [0], [1], [0, 0, 1, 1], [], []>} : vector<8x256xf32>, vector<256x128xf32>, vector<8x128xf32> -> vector<8x128xf32>
    %9 = arith.addf %7, %8 : vector<8x128xf32>
    %cst_14 = arith.constant dense<0.000000e+00> : vector<8x128xf32>
    %10 = tpu.matmul %9, %2, %cst_14 {dimension_numbers = #tpu.dot_dimension_numbers<[1], [0], [0], [1], [0, 0, 1, 1], [], []>} : vector<8x128xf32>, vector<128x128xf32>, vector<8x128xf32> -> vector<8x128xf32>
    %11 = arith.mulf %9, %9 : vector<8x128xf32>
    %cst_15 = arith.constant dense<0.000000e+00> : vector<8x128xf32>
    %12 = tpu.matmul %11, %2, %cst_15 {dimension_numbers = #tpu.dot_dimension_numbers<[1], [0], [0], [1], [0, 0, 1, 1], [], []>} : vector<8x128xf32>, vector<128x128xf32>, vector<8x128xf32> -> vector<8x128xf32>
    %13 = arith.mulf %10, %10 : vector<8x128xf32>
    %14 = arith.subf %12, %13 : vector<8x128xf32>
    %cst_16 = arith.constant 0.000000e+00 : f32
    %15 = vector.broadcast %cst_16 : f32 to vector<8x128xf32>
    %16 = arith.maximumf %14, %15 : vector<8x128xf32>
    %17 = arith.subf %9, %10 : vector<8x128xf32>
    %cst_17 = arith.constant 9.99999974E-6 : f32
    %18 = vector.broadcast %cst_17 : f32 to vector<8x128xf32>
    %19 = arith.addf %16, %18 : vector<8x128xf32>
    %20 = math.rsqrt %19 : vector<8x128xf32>
    %21 = arith.mulf %17, %20 : vector<8x128xf32>
    %22 = arith.addf %5, %6 : vector<8x256xf32>
    %23 = vector.extract_strided_slice %22 {offsets = [0, 0], sizes = [8, 32], strides = [1, 1]} : vector<8x256xf32> to vector<8x32xf32>
    %24 = vector.extract_strided_slice %22 {offsets = [0, 32], sizes = [8, 32], strides = [1, 1]} : vector<8x256xf32> to vector<8x32xf32>
    %25 = arith.addf %23, %24 : vector<8x32xf32>
    %26 = vector.extract_strided_slice %22 {offsets = [0, 64], sizes = [8, 32], strides = [1, 1]} : vector<8x256xf32> to vector<8x32xf32>
    %27 = vector.extract_strided_slice %22 {offsets = [0, 96], sizes = [8, 32], strides = [1, 1]} : vector<8x256xf32> to vector<8x32xf32>
    %28 = arith.addf %26, %27 : vector<8x32xf32>
    %29 = vector.extract_strided_slice %22 {offsets = [0, 128], sizes = [8, 32], strides = [1, 1]} : vector<8x256xf32> to vector<8x32xf32>
    %30 = vector.extract_strided_slice %22 {offsets = [0, 160], sizes = [8, 32], strides = [1, 1]} : vector<8x256xf32> to vector<8x32xf32>
    %31 = arith.addf %29, %30 : vector<8x32xf32>
    %32 = vector.extract_strided_slice %22 {offsets = [0, 192], sizes = [8, 32], strides = [1, 1]} : vector<8x256xf32> to vector<8x32xf32>
    %33 = vector.extract_strided_slice %22 {offsets = [0, 224], sizes = [8, 32], strides = [1, 1]} : vector<8x256xf32> to vector<8x32xf32>
    %34 = arith.addf %32, %33 : vector<8x32xf32>
    %35 = tpu.concatenate %25, %28, %31, %34 in 1 : vector<8x32xf32>, vector<8x32xf32>, vector<8x32xf32>, vector<8x32xf32> -> vector<8x128xf32>
    %36 = vector.broadcast %3 : vector<1x128xf32> to vector<8x128xf32>
    %37 = arith.mulf %21, %36 : vector<8x128xf32>
    %38 = vector.broadcast %4 : vector<1x128xf32> to vector<8x128xf32>
    %39 = arith.addf %37, %38 : vector<8x128xf32>
    %cst_18 = arith.constant 1.250000e-01 : f32
    %40 = vector.broadcast %cst_18 : f32 to vector<8x128xf32>
    %41 = arith.mulf %40, %35 : vector<8x128xf32>
    %42 = arith.addf %39, %41 : vector<8x128xf32>
    %c0_19 = arith.constant 0 : index
    %c0_20 = arith.constant 0 : index
    %43 = vector.load %arg8[%c0_19, %c0_20] : memref<8x256xf32, #tpu.memory_space<vmem>>, vector<8x128xf32>
    tpu.vector_store %arg8[%c0_19, %c0_20], %42 {strides = array<i32>} : memref<8x256xf32, #tpu.memory_space<vmem>>, vector<8x128xf32>,
    %c0_21 = arith.constant 0 : index
    %c256 = arith.constant 256 : index
    %44 = vector.load %arg1[%c0_21, %c256] : memref<8x512xf32, #tpu.memory_space<vmem>>, vector<8x256xf32>
    %c0_22 = arith.constant 0 : index
    %c256_23 = arith.constant 256 : index
    %45 = vector.load %arg2[%c0_22, %c256_23] : memref<8x512xf32, #tpu.memory_space<vmem>>, vector<8x256xf32>
    %cst_24 = arith.constant dense<0.000000e+00> : vector<8x128xf32>
    %46 = tpu.matmul %44, %0, %cst_24 {dimension_numbers = #tpu.dot_dimension_numbers<[1], [0], [0], [1], [0, 0, 1, 1], [], []>} : vector<8x256xf32>, vector<256x128xf32>, vector<8x128xf32> -> vector<8x128xf32>
    %cst_25 = arith.constant dense<0.000000e+00> : vector<8x128xf32>
    %47 = tpu.matmul %45, %1, %cst_25 {dimension_numbers = #tpu.dot_dimension_numbers<[1], [0], [0], [1], [0, 0, 1, 1], [], []>} : vector<8x256xf32>, vector<256x128xf32>, vector<8x128xf32> -> vector<8x128xf32>
    %48 = arith.addf %46, %47 : vector<8x128xf32>
    %cst_26 = arith.constant dense<0.000000e+00> : vector<8x128xf32>
    %49 = tpu.matmul %48, %2, %cst_26 {dimension_numbers = #tpu.dot_dimension_numbers<[1], [0], [0], [1], [0, 0, 1, 1], [], []>} : vector<8x128xf32>, vector<128x128xf32>, vector<8x128xf32> -> vector<8x128xf32>
    %50 = arith.mulf %48, %48 : vector<8x128xf32>
    %cst_27 = arith.constant dense<0.000000e+00> : vector<8x128xf32>
    %51 = tpu.matmul %50, %2, %cst_27 {dimension_numbers = #tpu.dot_dimension_numbers<[1], [0], [0], [1], [0, 0, 1, 1], [], []>} : vector<8x128xf32>, vector<128x128xf32>, vector<8x128xf32> -> vector<8x128xf32>
    %52 = arith.mulf %49, %49 : vector<8x128xf32>
    %53 = arith.subf %51, %52 : vector<8x128xf32>
    %cst_28 = arith.constant 0.000000e+00 : f32
    %54 = vector.broadcast %cst_28 : f32 to vector<8x128xf32>
    %55 = arith.maximumf %53, %54 : vector<8x128xf32>
    %56 = arith.subf %48, %49 : vector<8x128xf32>
    %cst_29 = arith.constant 9.99999974E-6 : f32
    %57 = vector.broadcast %cst_29 : f32 to vector<8x128xf32>
    %58 = arith.addf %55, %57 : vector<8x128xf32>
    %59 = math.rsqrt %58 : vector<8x128xf32>
    %60 = arith.mulf %56, %59 : vector<8x128xf32>
    %61 = arith.addf %44, %45 : vector<8x256xf32>
    %62 = vector.extract_strided_slice %61 {offsets = [0, 0], sizes = [8, 32], strides = [1, 1]} : vector<8x256xf32> to vector<8x32xf32>
    %63 = vector.extract_strided_slice %61 {offsets = [0, 32], sizes = [8, 32], strides = [1, 1]} : vector<8x256xf32> to vector<8x32xf32>
    %64 = arith.addf %62, %63 : vector<8x32xf32>
    %65 = vector.extract_strided_slice %61 {offsets = [0, 64], sizes = [8, 32], strides = [1, 1]} : vector<8x256xf32> to vector<8x32xf32>
    %66 = vector.extract_strided_slice %61 {offsets = [0, 96], sizes = [8, 32], strides = [1, 1]} : vector<8x256xf32> to vector<8x32xf32>
    %67 = arith.addf %65, %66 : vector<8x32xf32>
    %68 = vector.extract_strided_slice %61 {offsets = [0, 128], sizes = [8, 32], strides = [1, 1]} : vector<8x256xf32> to vector<8x32xf32>
    %69 = vector.extract_strided_slice %61 {offsets = [0, 160], sizes = [8, 32], strides = [1, 1]} : vector<8x256xf32> to vector<8x32xf32>
    %70 = arith.addf %68, %69 : vector<8x32xf32>
    %71 = vector.extract_strided_slice %61 {offsets = [0, 192], sizes = [8, 32], strides = [1, 1]} : vector<8x256xf32> to vector<8x32xf32>
    %72 = vector.extract_strided_slice %61 {offsets = [0, 224], sizes = [8, 32], strides = [1, 1]} : vector<8x256xf32> to vector<8x32xf32>
    %73 = arith.addf %71, %72 : vector<8x32xf32>
    %74 = tpu.concatenate %64, %67, %70, %73 in 1 : vector<8x32xf32>, vector<8x32xf32>, vector<8x32xf32>, vector<8x32xf32> -> vector<8x128xf32>
    %75 = vector.broadcast %3 : vector<1x128xf32> to vector<8x128xf32>
    %76 = arith.mulf %60, %75 : vector<8x128xf32>
    %77 = vector.broadcast %4 : vector<1x128xf32> to vector<8x128xf32>
    %78 = arith.addf %76, %77 : vector<8x128xf32>
    %cst_30 = arith.constant 1.250000e-01 : f32
    %79 = vector.broadcast %cst_30 : f32 to vector<8x128xf32>
    %80 = arith.mulf %79, %74 : vector<8x128xf32>
    %81 = arith.addf %78, %80 : vector<8x128xf32>
    %c0_31 = arith.constant 0 : index
    %c128 = arith.constant 128 : index
    %82 = vector.load %arg8[%c0_31, %c128] : memref<8x256xf32, #tpu.memory_space<vmem>>, vector<8x128xf32>
    tpu.vector_store %arg8[%c0_31, %c128], %81 {strides = array<i32>} : memref<8x256xf32, #tpu.memory_space<vmem>>, vector<8x128xf32>,
    return
  }
  func.func @transform_0(%arg0: i32) -> (i32, i32) {
    %c0_i32 = arith.constant 0 : i32
    %c0_i32_0 = arith.constant 0 : i32
    return %arg0, %c0_i32 : i32, i32
  }
  func.func @transform_1(%arg0: i32) -> (i32, i32) {
    %c1_i32 = arith.constant 1 : i32
    %c0_i32 = arith.constant 0 : i32
    return %arg0, %c1_i32 : i32, i32
  }
  func.func @transform_2(%arg0: i32) -> (i32, i32) {
    %c0_i32 = arith.constant 0 : i32
    %c0_i32_0 = arith.constant 0 : i32
    %c0_i32_1 = arith.constant 0 : i32
    return %c0_i32, %c0_i32_0 : i32, i32
  }
  func.func @transform_3(%arg0: i32) -> (i32, i32) {
    %c0_i32 = arith.constant 0 : i32
    %c0_i32_0 = arith.constant 0 : i32
    %c0_i32_1 = arith.constant 0 : i32
    return %c0_i32, %c0_i32_0 : i32, i32
  }
  func.func @transform_4(%arg0: i32) -> (i32, i32) {
    %c0_i32 = arith.constant 0 : i32
    %c0_i32_0 = arith.constant 0 : i32
    %c0_i32_1 = arith.constant 0 : i32
    return %c0_i32, %c0_i32_0 : i32, i32
  }
  func.func @transform_5(%arg0: i32) -> (i32, i32) {
    %c0_i32 = arith.constant 0 : i32
    %c0_i32_0 = arith.constant 0 : i32
    %c0_i32_1 = arith.constant 0 : i32
    return %c0_i32, %c0_i32_0 : i32, i32
  }
  func.func @transform_6(%arg0: i32) -> (i32, i32) {
    %c0_i32 = arith.constant 0 : i32
    %c0_i32_0 = arith.constant 0 : i32
    %c0_i32_1 = arith.constant 0 : i32
    return %c0_i32, %c0_i32_0 : i32, i32
  }
  func.func @transform_7(%arg0: i32) -> (i32, i32) {
    %c0_i32 = arith.constant 0 : i32
    %c0_i32_0 = arith.constant 0 : i32
    return %arg0, %c0_i32 : i32, i32
  }
}

</mosaic_0001>

<llo_original>
// kernel: _forward.1
$region0: #{_forward.1}
  #allocation0 [shape = 'u32[]', space=smem, size = 0x4, offset = 0x4, fixed_abs, tag = 'smem constant byte address 0x4 - core index']
  #allocation1 [shape = 'u32[144,128]{1,0:T(1,128)}', space=vmem, size = 0x12000, scoped, tag = 'internal scratch']
  %s0 = inlined_call_operand.vmem [shape: f32[16,1024], index: 0, kind: input, shape index: {}, may-alias: {0,1}]
  %s1 = inlined_call_operand.vmem [shape: f32[16,1024], index: 1, kind: input, shape index: {}, may-alias: {0,1}]
  %s2 = inlined_call_operand.vmem [shape: f32[256,128], index: 2, kind: input, shape index: {}]
  %s3 = inlined_call_operand.vmem [shape: f32[256,128], index: 3, kind: input, shape index: {}]
  %s4 = inlined_call_operand.vmem [shape: f32[128,128], index: 4, kind: input, shape index: {}]
  %s5 = inlined_call_operand.vmem [shape: f32[1,128], index: 5, kind: input, shape index: {}]
  %s6 = inlined_call_operand.vmem [shape: f32[1,128], index: 6, kind: input, shape index: {}]
  %s7 = inlined_call_operand.vmem [shape: f32[16,256], index: 7, kind: output, shape index: {}]
  %s8 = sld [smem:[#allocation0]]
  $region61: #{_forward.1} parent=0
    _
  %s10 = ssub.s32 1, %s8
  %s11 = scalar_select 0, %s10, %s8
  loop: start=0, step=1, limit=4
  $region2: #{_forward.1} parent=0 // loop_pre_header
    _
  $region3: #{_forward.1} parent=0 // loop_header
    %s13 = sphi 0, %s17
    %p14 = scmp.ge.s32.totalorder %s13, 4
    %s23 = sphi 0, %s25
    %s26 = sphi 0, %s23
    %s27 = sphi 0, %s26
    %s43 = sphi 0, %s27
    %s49 = sphi 0, %s51
    %s52 = sphi 0, %s49
    %s53 = sphi 0, %s52
    %s69 = sphi 0, %s53
    %s73 = sphi 0, %s73
    %s75 = sphi 0, %s73
    %s76 = sphi 0, %s75
    %s90 = sphi 0, %s76
    %s94 = sphi 0, %s94
    %s96 = sphi 0, %s94
    %s97 = sphi 0, %s96
    %s111 = sphi 0, %s97
    %s115 = sphi 0, %s115
    %s117 = sphi 0, %s115
    %s118 = sphi 0, %s117
    %s132 = sphi 0, %s118
    %s136 = sphi 0, %s136
    %s138 = sphi 0, %s136
    %s139 = sphi 0, %s138
    %s153 = sphi 0, %s139
    %s157 = sphi 0, %s157
    %s159 = sphi 0, %s157
    %s160 = sphi 0, %s159
    %s174 = sphi 0, %s160
    %s180 = sphi 0, %s182
    %s183 = sphi 0, %s180
    %s184 = sphi 0, %s183
    %s200 = sphi 0, %s184
  $region4: #{_forward.1} parent=0 // loop_header_branch
    %16 = sbr.rel (%p14) target = $region8
  $region5: #{_forward.1} parent=0 // loop_body
    %s18 = ssub.s32 %s13, 1
    %s19 = ssub.s32 %s13, 2
    %s20 = sadd.s32 %s13, 1
    %s21 = ssub.s32 %s13, %s20
    %p22 = scmp.eq.s32.totalorder %s21, 0
    %s24 = sadd.s32 %s23, 1
    %s25 = scalar_select %p22, %s23, %s24
    %p28 = pneg %p22
    %p29 = scmp.eq.s32.totalorder %s13, 1
    %p30 = por %p28, %p29
    %p31 = scmp.ne.s32.totalorder %s23, %s26
    %p32 = scmp.eq.s32.totalorder %s13, 0
    %p33 = por %p31, %p32
    %p34 = scmp.ne.s32.totalorder %s23, %s26
    %p35 = scmp.eq.s32.totalorder %s18, 1
    %p36 = por %p34, %p35
    %p37 = scmp.ne.s32.totalorder %s26, %s27
    %p38 = scmp.eq.s32.totalorder %s18, 0
    %p39 = por %p37, %p38
    %p40 = scmp.ne.s32.totalorder %s26, %s27
    %p41 = scmp.eq.s32.totalorder %s19, 1
    %p42 = por %p40, %p41
    %p44 = scmp.ne.s32.totalorder %s27, %s43
    %p45 = scmp.eq.s32.totalorder %s19, 0
    %p46 = por %p44, %p45
    %s47 = ssub.s32 %s13, %s20
    %p48 = scmp.eq.s32.totalorder %s47, 0
    %s50 = sadd.s32 %s49, 1
    %s51 = scalar_select %p48, %s49, %s50
    %p54 = pneg %p48
    %p55 = scmp.eq.s32.totalorder %s13, 1
    %p56 = por %p54, %p55
    %p57 = scmp.ne.s32.totalorder %s49, %s52
    %p58 = scmp.eq.s32.totalorder %s13, 0
    %p59 = por %p57, %p58
    %p60 = scmp.ne.s32.totalorder %s49, %s52
    %p61 = scmp.eq.s32.totalorder %s18, 1
    %p62 = por %p60, %p61
    %p63 = scmp.ne.s32.totalorder %s52, %s53
    %p64 = scmp.eq.s32.totalorder %s18, 0
    %p65 = por %p63, %p64
    %p66 = scmp.ne.s32.totalorder %s52, %s53
    %p67 = scmp.eq.s32.totalorder %s19, 1
    %p68 = por %p66, %p67
    %p70 = scmp.ne.s32.totalorder %s53, %s69
    %p71 = scmp.eq.s32.totalorder %s19, 0
    %p72 = por %p70, %p71
    %s74 = sadd.s32 %s73, 1
    %p77 = scmp.eq.s32.totalorder %s13, 1
    %p78 = scmp.ne.s32.totalorder %s73, %s75
    %p79 = scmp.eq.s32.totalorder %s13, 0
    %p80 = por %p78, %p79
    %p81 = scmp.ne.s32.totalorder %s73, %s75
    %p82 = scmp.eq.s32.totalorder %s18, 1
    %p83 = por %p81, %p82
    %p84 = scmp.ne.s32.totalorder %s75, %s76
    %p85 = scmp.eq.s32.totalorder %s18, 0
    %p86 = por %p84, %p85
    %p87 = scmp.ne.s32.totalorder %s75, %s76
    %p88 = scmp.eq.s32.totalorder %s19, 1
    %p89 = por %p87, %p88
    %p91 = scmp.ne.s32.totalorder %s76, %s90
    %p92 = scmp.eq.s32.totalorder %s19, 0
    %p93 = por %p91, %p92
    %s95 = sadd.s32 %s94, 1
    %p98 = scmp.eq.s32.totalorder %s13, 1
    %p99 = scmp.ne.s32.totalorder %s94, %s96
    %p100 = scmp.eq.s32.totalorder %s13, 0
    %p101 = por %p99, %p100
    %p102 = scmp.ne.s32.totalorder %s94, %s96
    %p103 = scmp.eq.s32.totalorder %s18, 1
    %p104 = por %p102, %p103
    %p105 = scmp.ne.s32.totalorder %s96, %s97
    %p106 = scmp.eq.s32.totalorder %s18, 0
    %p107 = por %p105, %p106
    %p108 = scmp.ne.s32.totalorder %s96, %s97
    %p109 = scmp.eq.s32.totalorder %s19, 1
    %p110 = por %p108, %p109
    %p112 = scmp.ne.s32.totalorder %s97, %s111
    %p113 = scmp.eq.s32.totalorder %s19, 0
    %p114 = por %p112, %p113
    %s116 = sadd.s32 %s115, 1
    %p119 = scmp.eq.s32.totalorder %s13, 1
    %p120 = scmp.ne.s32.totalorder %s115, %s117
    %p121 = scmp.eq.s32.totalorder %s13, 0
    %p122 = por %p120, %p121
    %p123 = scmp.ne.s32.totalorder %s115, %s117
    %p124 = scmp.eq.s32.totalorder %s18, 1
    %p125 = por %p123, %p124
    %p126 = scmp.ne.s32.totalorder %s117, %s118
    %p127 = scmp.eq.s32.totalorder %s18, 0
    %p128 = por %p126, %p127
    %p129 = scmp.ne.s32.totalorder %s117, %s118
    %p130 = scmp.eq.s32.totalorder %s19, 1
    %p131 = por %p129, %p130
    %p133 = scmp.ne.s32.totalorder %s118, %s132
    %p134 = scmp.eq.s32.totalorder %s19, 0
    %p135 = por %p133, %p134
    %s137 = sadd.s32 %s136, 1
    %p140 = scmp.eq.s32.totalorder %s13, 1
    %p141 = scmp.ne.s32.totalorder %s136, %s138
    %p142 = scmp.eq.s32.totalorder %s13, 0
    %p143 = por %p141, %p142
    %p144 = scmp.ne.s32.totalorder %s136, %s138
    %p145 = scmp.eq.s32.totalorder %s18, 1
    %p146 = por %p144, %p145
    %p147 = scmp.ne.s32.totalorder %s138, %s139
    %p148 = scmp.eq.s32.totalorder %s18, 0
    %p149 = por %p147, %p148
    %p150 = scmp.ne.s32.totalorder %s138, %s139
    %p151 = scmp.eq.s32.totalorder %s19, 1
    %p152 = por %p150, %p151
    %p154 = scmp.ne.s32.totalorder %s139, %s153
    %p155 = scmp.eq.s32.totalorder %s19, 0
    %p156 = por %p154, %p155
    %s158 = sadd.s32 %s157, 1
    %p161 = scmp.eq.s32.totalorder %s13, 1
    %p162 = scmp.ne.s32.totalorder %s157, %s159
    %p163 = scmp.eq.s32.totalorder %s13, 0
    %p164 = por %p162, %p163
    %p165 = scmp.ne.s32.totalorder %s157, %s159
    %p166 = scmp.eq.s32.totalorder %s18, 1
    %p167 = por %p165, %p166
    %p168 = scmp.ne.s32.totalorder %s159, %s160
    %p169 = scmp.eq.s32.totalorder %s18, 0
    %p170 = por %p168, %p169
    %p171 = scmp.ne.s32.totalorder %s159, %s160
    %p172 = scmp.eq.s32.totalorder %s19, 1
    %p173 = por %p171, %p172
    %p175 = scmp.ne.s32.totalorder %s160, %s174
    %p176 = scmp.eq.s32.totalorder %s19, 0
    %p177 = por %p175, %p176
    %s178 = ssub.s32 %s13, %s20
    %p179 = scmp.eq.s32.totalorder %s178, 0
    %s181 = sadd.s32 %s180, 1
    %s182 = scalar_select %p179, %s180, %s181
    %p185 = pneg %p179
    %p186 = scmp.eq.s32.totalorder %s13, 1
    %p187 = por %p185, %p186
    %p188 = scmp.ne.s32.totalorder %s180, %s183
    %p189 = scmp.eq.s32.totalorder %s13, 0
    %p190 = por %p188, %p189
    %p191 = scmp.ne.s32.totalorder %s180, %s183
    %p192 = scmp.eq.s32.totalorder %s18, 1
    %p193 = por %p191, %p192
    %p194 = scmp.ne.s32.totalorder %s183, %s184
    %p195 = scmp.eq.s32.totalorder %s18, 0
    %p196 = por %p194, %p195
    %p197 = scmp.ne.s32.totalorder %s183, %s184
    %p198 = scmp.eq.s32.totalorder %s19, 1
    %p199 = por %p197, %p198
    %p201 = scmp.ne.s32.totalorder %s184, %s200
    %p202 = scmp.eq.s32.totalorder %s19, 0
    %p203 = por %p201, %p202
    %p204 = scmp.le.s32.totalorder 1, %s13
    %p205 = scmp.lt.s32.totalorder %s13, 3
    %p206 = pnand %p204, %p205
    %p207 = pneg %p206
    // Predicated region
    $region9: #{_forward.1} parent=5 // pred_check
      _
    $region10: #{_forward.1} parent=5 // pred_check_branch
      %209 = sbr.rel (%p206) target = $region12
    $region11: #{_forward.1} parent=5 // pred_region
      %s210 = ssub.s32 %s13, 1
      // Predicated region
      $region13: #{_forward.1} parent=11 // pred_check
        %p211 = pneg %p86
      $region14: #{_forward.1} parent=11 // pred_check_branch
        %213 = sbr.rel (%p211) target = $region16
      $region15: #{_forward.1} parent=11 // pred_region
        _
      $region16: #{_forward.1} parent=11 // pred_fallthru
        _
      // Predicated region
      $region17: #{_forward.1} parent=11 // pred_check
        %p214 = pneg %p107
      $region18: #{_forward.1} parent=11 // pred_check_branch
        %216 = sbr.rel (%p214) target = $region20
      $region19: #{_forward.1} parent=11 // pred_region
        _
      $region20: #{_forward.1} parent=11 // pred_fallthru
        _
      // Predicated region
      $region21: #{_forward.1} parent=11 // pred_check
        %p217 = pneg %p128
      $region22: #{_forward.1} parent=11 // pred_check_branch
        %219 = sbr.rel (%p217) target = $region24
      $region23: #{_forward.1} parent=11 // pred_region
        _
      $region24: #{_forward.1} parent=11 // pred_fallthru
        _
      // Predicated region
      $region25: #{_forward.1} parent=11 // pred_check
        %p220 = pneg %p149
      $region26: #{_forward.1} parent=11 // pred_check_branch
        %222 = sbr.rel (%p220) target = $region28
      $region27: #{_forward.1} parent=11 // pred_region
        _
      $region28: #{_forward.1} parent=11 // pred_fallthru
        _
      // Predicated region
      $region29: #{_forward.1} parent=11 // pred_check
        %p223 = pneg %p170
      $region30: #{_forward.1} parent=11 // pred_check_branch
        %225 = sbr.rel (%p223) target = $region32
      $region31: #{_forward.1} parent=11 // pred_region
        _
      $region32: #{_forward.1} parent=11 // pred_fallthru
        _
    $region12: #{_forward.1} parent=5 // pred_fallthru
      _
    %p226 = scmp.lt.s32.totalorder %s13, 2
    // Predicated region
    $region33: #{_forward.1} parent=5 // pred_check
      %p227 = pneg %p226
    $region34: #{_forward.1} parent=5 // pred_check_branch
      %229 = sbr.rel (%p227) target = $region36
    $region35: #{_forward.1} parent=5 // pred_region
      // Predicated region
      $region37: #{_forward.1} parent=35 // pred_check
        %p230 = pneg %p33
      $region38: #{_forward.1} parent=35 // pred_check_branch
        %232 = sbr.rel (%p230) target = $region40
      $region39: #{_forward.1} parent=35 // pred_region
        %p233 = scmp.lt.s32.totalorder %s13, 1
        %s234 = scalar_select %p233, %s13, 1
        %s235 = smul.addr %s234, 8
        %s236 = smul.addr %s235, 8
        %s237 = scalar_lea.vmem %s0, %s236
      $region40: #{_forward.1} parent=35 // pred_fallthru
        _
      // Predicated region
      $region41: #{_forward.1} parent=35 // pred_check
        %p238 = pneg %p59
      $region42: #{_forward.1} parent=35 // pred_check_branch
        %240 = sbr.rel (%p238) target = $region44
      $region43: #{_forward.1} parent=35 // pred_region
        %p241 = scmp.lt.s32.totalorder %s13, 1
        %s242 = scalar_select %p241, %s13, 1
        %s243 = smul.addr %s242, 8
        %s244 = sadd.s32 4, %s243
        %s245 = smul.addr %s244, 8
        %s246 = scalar_lea.vmem %s1, %s245
      $region44: #{_forward.1} parent=35 // pred_fallthru
        _
    $region36: #{_forward.1} parent=5 // pred_fallthru
      _
    %p247 = scmp.le.s32.totalorder 1, %s13
    %p248 = scmp.lt.s32.totalorder %s13, 3
    %p249 = pnand %p247, %p248
    %p250 = pneg %p249
    // Predicated region
    $region45: #{_forward.1} parent=5 // pred_check
      _
    $region46: #{_forward.1} parent=5 // pred_check_branch
      %252 = sbr.rel (%p249) target = $region48
    $region47: #{_forward.1} parent=5 // pred_region
      %s253 = ssub.s32 %s13, 1
      %p254 = scmp.lt.s32.totalorder %s18, 1
      %s255 = scalar_select %p254, %s18, 1
      %s256 = smul.addr %s255, 8
      %s257 = smul.addr %s256, 8
      %s258 = scalar_lea.vmem %s0, %s257
      %p259 = pneg %p39
      %p260 = pneg %p36
      %p261 = scmp.lt.s32.totalorder %s18, 1
      %s262 = scalar_select %p261, %s18, 1
      %s263 = smul.addr %s262, 8
      %s264 = sadd.s32 4, %s263
      %s265 = smul.addr %s264, 8
      %s266 = scalar_lea.vmem %s1, %s265
      %p267 = pneg %p65
      %p268 = pneg %p62
      %p269 = pneg %p86
      %p270 = pneg %p83
      %p271 = pneg %p107
      %p272 = pneg %p104
      %p273 = pneg %p128
      %p274 = pneg %p125
      %p275 = pneg %p149
      %p276 = pneg %p146
      %p277 = pneg %p170
      %p278 = pneg %p167
      %p279 = pneg %p196
      %p280 = pneg %p193
      %p281 = scmp.lt.s32.totalorder %s18, 1
      %s282 = scalar_select %p281, %s18, 1
      %s283 = smul.addr %s282, 2
      %s284 = smul.addr %s283, 8
      %s285 = scalar_lea.vmem %s7, %s284
      %p286 = scmp.lt.s32.totalorder %s18, 1
      %s287 = scalar_select %p286, %s18, 1
      %s288 = smul.addr %s287, 8
      %s289 = smul.addr %s288, 8
      %s290 = scalar_lea.vmem %s0, %s289
      %p291 = scmp.lt.s32.totalorder %s18, 1
      %s292 = scalar_select %p291, %s18, 1
      %s293 = smul.addr %s292, 8
      %s294 = sadd.s32 4, %s293
      %s295 = smul.addr %s294, 8
      %s296 = scalar_lea.vmem %s1, %s295
      %p297 = scmp.lt.s32.totalorder %s18, 1
      %s298 = scalar_select %p297, %s18, 1
      %s299 = smul.addr %s298, 2
      %s300 = smul.addr %s299, 8
      %s301 = scalar_lea.vmem %s7, %s300
      %v302 = vld [vmem:[%s2] sm:$0xff]
      %v303 = vld [vmem:[%s2 + $0x8] sm:$0xff]
      %v304 = vld [vmem:[%s2 + $0x10] sm:$0xff]
      %v305 = vld [vmem:[%s2 + $0x18] sm:$0xff]
      %v306 = vld [vmem:[%s2 + $0x20] sm:$0xff]
      %v307 = vld [vmem:[%s2 + $0x28] sm:$0xff]
      %v308 = vld [vmem:[%s2 + $0x30] sm:$0xff]
      %v309 = vld [vmem:[%s2 + $0x38] sm:$0xff]
      %v310 = vld [vmem:[%s2 + $0x40] sm:$0xff]
      %v311 = vld [vmem:[%s2 + $0x48] sm:$0xff]
      %v312 = vld [vmem:[%s2 + $0x50] sm:$0xff]
      %v313 = vld [vmem:[%s2 + $0x58] sm:$0xff]
      %v314 = vld [vmem:[%s2 + $0x60] sm:$0xff]
      %v315 = vld [vmem:[%s2 + $0x68] sm:$0xff]
      %v316 = vld [vmem:[%s2 + $0x70] sm:$0xff]
      %v317 = vld [vmem:[%s2 + $0x78] sm:$0xff]
      %v318 = vld [vmem:[%s2 + $0x80] sm:$0xff]
      %v319 = vld [vmem:[%s2 + $0x88] sm:$0xff]
      %v320 = vld [vmem:[%s2 + $0x90] sm:$0xff]
      %v321 = vld [vmem:[%s2 + $0x98] sm:$0xff]
      %v322 = vld [vmem:[%s2 + $0xa0] sm:$0xff]
      %v323 = vld [vmem:[%s2 + $0xa8] sm:$0xff]
      %v324 = vld [vmem:[%s2 + $0xb0] sm:$0xff]
      %v325 = vld [vmem:[%s2 + $0xb8] sm:$0xff]
      %v326 = vld [vmem:[%s2 + $0xc0] sm:$0xff]
      %v327 = vld [vmem:[%s2 + $0xc8] sm:$0xff]
      %v328 = vld [vmem:[%s2 + $0xd0] sm:$0xff]
      %v329 = vld [vmem:[%s2 + $0xd8] sm:$0xff]
      %v330 = vld [vmem:[%s2 + $0xe0] sm:$0xff]
      %v331 = vld [vmem:[%s2 + $0xe8] sm:$0xff]
      %v332 = vld [vmem:[%s2 + $0xf0] sm:$0xff]
      %v333 = vld [vmem:[%s2 + $0xf8] sm:$0xff]
      %v334 = vld [vmem:[%s3] sm:$0xff]
      %v335 = vld [vmem:[%s3 + $0x8] sm:$0xff]
      %v336 = vld [vmem:[%s3 + $0x10] sm:$0xff]
      %v337 = vld [vmem:[%s3 + $0x18] sm:$0xff]
      %v338 = vld [vmem:[%s3 + $0x20] sm:$0xff]
      %v339 = vld [vmem:[%s3 + $0x28] sm:$0xff]
      %v340 = vld [vmem:[%s3 + $0x30] sm:$0xff]
      %v341 = vld [vmem:[%s3 + $0x38] sm:$0xff]
      %v342 = vld [vmem:[%s3 + $0x40] sm:$0xff]
      %v343 = vld [vmem:[%s3 + $0x48] sm:$0xff]
      %v344 = vld [vmem:[%s3 + $0x50] sm:$0xff]
      %v345 = vld [vmem:[%s3 + $0x58] sm:$0xff]
      %v346 = vld [vmem:[%s3 + $0x60] sm:$0xff]
      %v347 = vld [vmem:[%s3 + $0x68] sm:$0xff]
      %v348 = vld [vmem:[%s3 + $0x70] sm:$0xff]
      %v349 = vld [vmem:[%s3 + $0x78] sm:$0xff]
      %v350 = vld [vmem:[%s3 + $0x80] sm:$0xff]
      %v351 = vld [vmem:[%s3 + $0x88] sm:$0xff]
      %v352 = vld [vmem:[%s3 + $0x90] sm:$0xff]
      %v353 = vld [vmem:[%s3 + $0x98] sm:$0xff]
      %v354 = vld [vmem:[%s3 + $0xa0] sm:$0xff]
      %v355 = vld [vmem:[%s3 + $0xa8] sm:$0xff]
      %v356 = vld [vmem:[%s3 + $0xb0] sm:$0xff]
      %v357 = vld [vmem:[%s3 + $0xb8] sm:$0xff]
      %v358 = vld [vmem:[%s3 + $0xc0] sm:$0xff]
      %v359 = vld [vmem:[%s3 + $0xc8] sm:$0xff]
      %v360 = vld [vmem:[%s3 + $0xd0] sm:$0xff]
      %v361 = vld [vmem:[%s3 + $0xd8] sm:$0xff]
      %v362 = vld [vmem:[%s3 + $0xe0] sm:$0xff]
      %v363 = vld [vmem:[%s3 + $0xe8] sm:$0xff]
      %v364 = vld [vmem:[%s3 + $0xf0] sm:$0xff]
      %v365 = vld [vmem:[%s3 + $0xf8] sm:$0xff]
      %v366 = vld [vmem:[%s4] sm:$0xff]
      %v367 = vld [vmem:[%s4 + $0x8] sm:$0xff]
      %v368 = vld [vmem:[%s4 + $0x10] sm:$0xff]
      %v369 = vld [vmem:[%s4 + $0x18] sm:$0xff]
      %v370 = vld [vmem:[%s4 + $0x20] sm:$0xff]
      %v371 = vld [vmem:[%s4 + $0x28] sm:$0xff]
      %v372 = vld [vmem:[%s4 + $0x30] sm:$0xff]
      %v373 = vld [vmem:[%s4 + $0x38] sm:$0xff]
      %v374 = vld [vmem:[%s4 + $0x40] sm:$0xff]
      %v375 = vld [vmem:[%s4 + $0x48] sm:$0xff]
      %v376 = vld [vmem:[%s4 + $0x50] sm:$0xff]
      %v377 = vld [vmem:[%s4 + $0x58] sm:$0xff]
      %v378 = vld [vmem:[%s4 + $0x60] sm:$0xff]
      %v379 = vld [vmem:[%s4 + $0x68] sm:$0xff]
      %v380 = vld [vmem:[%s4 + $0x70] sm:$0xff]
      %v381 = vld [vmem:[%s4 + $0x78] sm:$0xff]
      %v382 = vld [vmem:[%s5] sm:$0x1]
      %v383 = vld [vmem:[%s6] sm:$0x1]
      %v384 = vld [vmem:[%s290] sm:$0xff]
      %v385 = vld [vmem:[%s290 + $0x8] sm:$0xff]
      %v386 = vld [vmem:[%s296] sm:$0xff]
      %v387 = vld [vmem:[%s296 + $0x8] sm:$0xff]
      %388 = vmatprep.subr.mxu0 0.0
      %389 = vmatpush1.msra.mxu0 %v334
      %390 = vmatprep.subr.mxu0 0.0
      %391 = vmatpush1.msra.mxu0 %v335
      %392 = vmatprep.subr.mxu0 0.0
      %393 = vmatpush1.msra.mxu0 %v336
      %394 = vmatprep.subr.mxu0 0.0
      %395 = vmatpush1.msra.mxu0 %v337
      %396 = vmatprep.subr.mxu0 0.0
      %397 = vmatpush1.msra.mxu0 %v338
      %398 = vmatprep.subr.mxu0 0.0
      %399 = vmatpush1.msra.mxu0 %v339
      %400 = vmatprep.subr.mxu0 0.0
      %401 = vmatpush1.msra.mxu0 %v340
      %402 = vmatprep.subr.mxu0 0.0
      %403 = vmatpush1.msra.mxu0 %v341
      %404 = vmatprep.subr.mxu0 0.0
      %405 = vmatpush1.msra.mxu0 %v342
      %406 = vmatprep.subr.mxu0 0.0
      %407 = vmatpush1.msra.mxu0 %v343
      %408 = vmatprep.subr.mxu0 0.0
      %409 = vmatpush1.msra.mxu0 %v344
      %410 = vmatprep.subr.mxu0 0.0
      %411 = vmatpush1.msra.mxu0 %v345
      %412 = vmatprep.subr.mxu0 0.0
      %413 = vmatpush1.msra.mxu0 %v346
      %414 = vmatprep.subr.mxu0 0.0
      %415 = vmatpush1.msra.mxu0 %v347
      %416 = vmatprep.subr.mxu0 0.0
      %417 = vmatpush1.msra.mxu0 %v348
      %418 = vmatprep.subr.mxu0 0.0
      %419 = vmatpush1.msra.mxu0 %v349
      %420 = vmatprep.subr.mxu0 0.0
      %421 = vmatpush1.msra.mxu0 %v350
      %422 = vmatprep.subr.mxu0 0.0
      %423 = vmatpush1.msra.mxu0 %v351
      %424 = vmatprep.subr.mxu0 0.0
      %425 = vmatpush1.msra.mxu0 %v352
      %426 = vmatprep.subr.mxu0 0.0
      %427 = vmatpush1.msra.mxu0 %v353
      %428 = vmatprep.subr.mxu0 0.0
      %429 = vmatpush1.msra.mxu0 %v354
      %430 = vmatprep.subr.mxu0 0.0
      %431 = vmatpush1.msra.mxu0 %v355
      %432 = vmatprep.subr.mxu0 0.0
      %433 = vmatpush1.msra.mxu0 %v356
      %434 = vmatprep.subr.mxu0 0.0
      %435 = vmatpush1.msra.mxu0 %v357
      %436 = vmatprep.subr.mxu0 0.0
      %437 = vmatpush1.msra.mxu0 %v358
      %438 = vmatprep.subr.mxu0 0.0
      %439 = vmatpush1.msra.mxu0 %v359
      %440 = vmatprep.subr.mxu0 0.0
      %441 = vmatpush1.msra.mxu0 %v360
      %442 = vmatprep.subr.mxu0 0.0
      %443 = vmatpush1.msra.mxu0 %v361
      %444 = vmatprep.subr.mxu0 0.0
      %445 = vmatpush1.msra.mxu0 %v362
      %446 = vmatprep.subr.mxu0 0.0
      %447 = vmatpush1.msra.mxu0 %v363
      %448 = vmatprep.subr.mxu0 0.0
      %449 = vmatpush1.msra.mxu0 %v364
      %450 = vmatprep.subr.mxu0 0.0
      %451 = vmatpush1.msra.mxu0 %v365
      %452 = vmatprep.mubr.f32.mxu0 %v387
      %453 = vmatmul.mubr.f32.gmra.mrb[0].mxu0 %v386
      %v454 = vpop.f32.mrb[0].mxu0
      %v455 = vadd.f32 0.0, %v454
      %v456 = vpop.f32.mrb[0].mxu0
      %457 = vdwg.mxu0
      %458 = vmatprep.subr.mxu0 0.0
      %459 = vmatpush1.msra.mxu0 %v302
      %460 = vmatprep.subr.mxu0 0.0
      %461 = vmatpush1.msra.mxu0 %v303
      %462 = vmatprep.subr.mxu0 0.0
      %463 = vmatpush1.msra.mxu0 %v304
      %464 = vmatprep.subr.mxu0 0.0
      %465 = vmatpush1.msra.mxu0 %v305
      %466 = vmatprep.subr.mxu0 0.0
      %467 = vmatpush1.msra.mxu0 %v306
      %468 = vmatprep.subr.mxu0 0.0
      %469 = vmatpush1.msra.mxu0 %v307
      %470 = vmatprep.subr.mxu0 0.0
      %471 = vmatpush1.msra.mxu0 %v308
      %472 = vmatprep.subr.mxu0 0.0
      %473 = vmatpush1.msra.mxu0 %v309
      %474 = vmatprep.subr.mxu0 0.0
      %475 = vmatpush1.msra.mxu0 %v310
      %476 = vmatprep.subr.mxu0 0.0
      %477 = vmatpush1.msra.mxu0 %v311
      %478 = vmatprep.subr.mxu0 0.0
      %479 = vmatpush1.msra.mxu0 %v312
      %480 = vmatprep.subr.mxu0 0.0
      %481 = vmatpush1.msra.mxu0 %v313
      %482 = vmatprep.subr.mxu0 0.0
      %483 = vmatpush1.msra.mxu0 %v314
      %484 = vmatprep.subr.mxu0 0.0
      %485 = vmatpush1.msra.mxu0 %v315
      %486 = vmatprep.subr.mxu0 0.0
      %487 = vmatpush1.msra.mxu0 %v316
      %488 = vmatprep.subr.mxu0 0.0
      %489 = vmatpush1.msra.mxu0 %v317
      %490 = vmatprep.subr.mxu0 0.0
      %491 = vmatpush1.msra.mxu0 %v318
      %492 = vmatprep.subr.mxu0 0.0
      %493 = vmatpush1.msra.mxu0 %v319
      %494 = vmatprep.subr.mxu0 0.0
      %495 = vmatpush1.msra.mxu0 %v320
      %496 = vmatprep.subr.mxu0 0.0
      %497 = vmatpush1.msra.mxu0 %v321
      %498 = vmatprep.subr.mxu0 0.0
      %499 = vmatpush1.msra.mxu0 %v322
      %500 = vmatprep.subr.mxu0 0.0
      %501 = vmatpush1.msra.mxu0 %v323
      %502 = vmatprep.subr.mxu0 0.0
      %503 = vmatpush1.msra.mxu0 %v324
      %504 = vmatprep.subr.mxu0 0.0
      %505 = vmatpush1.msra.mxu0 %v325
      %506 = vmatprep.subr.mxu0 0.0
      %507 = vmatpush1.msra.mxu0 %v326
      %508 = vmatprep.subr.mxu0 0.0
      %509 = vmatpush1.msra.mxu0 %v327
      %510 = vmatprep.subr.mxu0 0.0
      %511 = vmatpush1.msra.mxu0 %v328
      %512 = vmatprep.subr.mxu0 0.0
      %513 = vmatpush1.msra.mxu0 %v329
      %514 = vmatprep.subr.mxu0 0.0
      %515 = vmatpush1.msra.mxu0 %v330
      %516 = vmatprep.subr.mxu0 0.0
      %517 = vmatpush1.msra.mxu0 %v331
      %518 = vmatprep.subr.mxu0 0.0
      %519 = vmatpush1.msra.mxu0 %v332
      %520 = vmatprep.subr.mxu0 0.0
      %521 = vmatpush1.msra.mxu0 %v333
      %522 = vmatprep.mubr.f32.mxu0 %v385
      %523 = vmatmul.mubr.f32.gmra.mrb[0].mxu0 %v384
      %v524 = vpop.f32.mrb[0].mxu0
      %v525 = vadd.f32 %v455, %v524
      %v526 = vpop.f32.mrb[0].mxu0
      %527 = vdwg.mxu0
      %528 = vmatprep.subr.mxu0 0.0
      %529 = vmatpush1.msra.mxu0 %v366
      %530 = vmatprep.subr.mxu0 0.0
      %531 = vmatpush1.msra.mxu0 %v367
      %532 = vmatprep.subr.mxu0 0.0
      %533 = vmatpush1.msra.mxu0 %v368
      %534 = vmatprep.subr.mxu0 0.0
      %535 = vmatpush1.msra.mxu0 %v369
      %536 = vmatprep.subr.mxu0 0.0
      %537 = vmatpush1.msra.mxu0 %v370
      %538 = vmatprep.subr.mxu0 0.0
      %539 = vmatpush1.msra.mxu0 %v371
      %540 = vmatprep.subr.mxu0 0.0
      %541 = vmatpush1.msra.mxu0 %v372
      %542 = vmatprep.subr.mxu0 0.0
      %543 = vmatpush1.msra.mxu0 %v373
      %544 = vmatprep.subr.mxu0 0.0
      %545 = vmatpush1.msra.mxu0 %v374
      %546 = vmatprep.subr.mxu0 0.0
      %547 = vmatpush1.msra.mxu0 %v375
      %548 = vmatprep.subr.mxu0 0.0
      %549 = vmatpush1.msra.mxu0 %v376
      %550 = vmatprep.subr.mxu0 0.0
      %551 = vmatpush1.msra.mxu0 %v377
      %552 = vmatprep.subr.mxu0 0.0
      %553 = vmatpush1.msra.mxu0 %v378
      %554 = vmatprep.subr.mxu0 0.0
      %555 = vmatpush1.msra.mxu0 %v379
      %556 = vmatprep.subr.mxu0 0.0
      %557 = vmatpush1.msra.mxu0 %v380
      %558 = vmatprep.subr.mxu0 0.0
      %559 = vmatpush1.msra.mxu0 %v381
      %560 = vmatprep.subr.mxu0 0.0
      %561 = vmatpush1.msra.mxu0 0.0
      %562 = vmatprep.subr.mxu0 0.0
      %563 = vmatpush1.msra.mxu0 0.0
      %564 = vmatprep.subr.mxu0 0.0
      %565 = vmatpush1.msra.mxu0 0.0
      %566 = vmatprep.subr.mxu0 0.0
      %567 = vmatpush1.msra.mxu0 0.0
      %568 = vmatprep.subr.mxu0 0.0
      %569 = vmatpush1.msra.mxu0 0.0
      %570 = vmatprep.subr.mxu0 0.0
      %571 = vmatpush1.msra.mxu0 0.0
      %572 = vmatprep.subr.mxu0 0.0
      %573 = vmatpush1.msra.mxu0 0.0
      %574 = vmatprep.subr.mxu0 0.0
      %575 = vmatpush1.msra.mxu0 0.0
      %576 = vmatprep.subr.mxu0 0.0
      %577 = vmatpush1.msra.mxu0 0.0
      %578 = vmatprep.subr.mxu0 0.0
      %579 = vmatpush1.msra.mxu0 0.0
      %580 = vmatprep.subr.mxu0 0.0
      %581 = vmatpush1.msra.mxu0 0.0
      %582 = vmatprep.subr.mxu0 0.0
      %583 = vmatpush1.msra.mxu0 0.0
      %584 = vmatprep.subr.mxu0 0.0
      %585 = vmatpush1.msra.mxu0 0.0
      %586 = vmatprep.subr.mxu0 0.0
      %587 = vmatpush1.msra.mxu0 0.0
      %588 = vmatprep.subr.mxu0 0.0
      %589 = vmatpush1.msra.mxu0 0.0
      %590 = vmatprep.subr.mxu0 0.0
      %591 = vmatpush1.msra.mxu0 0.0
      %592 = vmatprep.mubr.f32.mxu0 0.0
      %593 = vmatmul.mubr.f32.gmra.mrb[0].mxu0 %v525
      %v594 = vpop.f32.mrb[0].mxu0
      %v595 = vadd.f32 0.0, %v594
      %v596 = vpop.f32.mrb[0].mxu0
      %597 = vdwg.mxu0
      %v598 = vmul.f32 %v525, %v525
      %599 = vmatprep.subr.mxu0 0.0
      %600 = vmatpush1.msra.mxu0 %v366
      %601 = vmatprep.subr.mxu0 0.0
      %602 = vmatpush1.msra.mxu0 %v367
      %603 = vmatprep.subr.mxu0 0.0
      %604 = vmatpush1.msra.mxu0 %v368
      %605 = vmatprep.subr.mxu0 0.0
      %606 = vmatpush1.msra.mxu0 %v369
      %607 = vmatprep.subr.mxu0 0.0
      %608 = vmatpush1.msra.mxu0 %v370
      %609 = vmatprep.subr.mxu0 0.0
      %610 = vmatpush1.msra.mxu0 %v371
      %611 = vmatprep.subr.mxu0 0.0
      %612 = vmatpush1.msra.mxu0 %v372
      %613 = vmatprep.subr.mxu0 0.0
      %614 = vmatpush1.msra.mxu0 %v373
      %615 = vmatprep.subr.mxu0 0.0
      %616 = vmatpush1.msra.mxu0 %v374
      %617 = vmatprep.subr.mxu0 0.0
      %618 = vmatpush1.msra.mxu0 %v375
      %619 = vmatprep.subr.mxu0 0.0
      %620 = vmatpush1.msra.mxu0 %v376
      %621 = vmatprep.subr.mxu0 0.0
      %622 = vmatpush1.msra.mxu0 %v377
      %623 = vmatprep.subr.mxu0 0.0
      %624 = vmatpush1.msra.mxu0 %v378
      %625 = vmatprep.subr.mxu0 0.0
      %626 = vmatpush1.msra.mxu0 %v379
      %627 = vmatprep.subr.mxu0 0.0
      %628 = vmatpush1.msra.mxu0 %v380
      %629 = vmatprep.subr.mxu0 0.0
      %630 = vmatpush1.msra.mxu0 %v381
      %631 = vmatprep.subr.mxu0 0.0
      %632 = vmatpush1.msra.mxu0 0.0
      %633 = vmatprep.subr.mxu0 0.0
      %634 = vmatpush1.msra.mxu0 0.0
      %635 = vmatprep.subr.mxu0 0.0
      %636 = vmatpush1.msra.mxu0 0.0
      %637 = vmatprep.subr.mxu0 0.0
      %638 = vmatpush1.msra.mxu0 0.0
      %639 = vmatprep.subr.mxu0 0.0
      %640 = vmatpush1.msra.mxu0 0.0
      %641 = vmatprep.subr.mxu0 0.0
      %642 = vmatpush1.msra.mxu0 0.0
      %643 = vmatprep.subr.mxu0 0.0
      %644 = vmatpush1.msra.mxu0 0.0
      %645 = vmatprep.subr.mxu0 0.0
      %646 = vmatpush1.msra.mxu0 0.0
      %647 = vmatprep.subr.mxu0 0.0
      %648 = vmatpush1.msra.mxu0 0.0
      %649 = vmatprep.subr.mxu0 0.0
      %650 = vmatpush1.msra.mxu0 0.0
      %651 = vmatprep.subr.mxu0 0.0
      %652 = vmatpush1.msra.mxu0 0.0
      %653 = vmatprep.subr.mxu0 0.0
      %654 = vmatpush1.msra.mxu0 0.0
      %655 = vmatprep.subr.mxu0 0.0
      %656 = vmatpush1.msra.mxu0 0.0
      %657 = vmatprep.subr.mxu0 0.0
      %658 = vmatpush1.msra.mxu0 0.0
      %659 = vmatprep.subr.mxu0 0.0
      %660 = vmatpush1.msra.mxu0 0.0
      %661 = vmatprep.subr.mxu0 0.0
      %662 = vmatpush1.msra.mxu0 0.0
      %663 = vmatprep.mubr.f32.mxu0 0.0
      %664 = vmatmul.mubr.f32.gmra.mrb[0].mxu0 %v598
      %v665 = vpop.f32.mrb[0].mxu0
      %v666 = vadd.f32 0.0, %v665
      %v667 = vpop.f32.mrb[0].mxu0
      %668 = vdwg.mxu0
      %v669 = vmul.f32 %v595, %v595
      %v670 = vsub.f32 %v666, %v669
      %v671 = vmax.f32 %v670, 0.0
      %v672 = vsub.f32 %v525, %v595
      %v673 = vadd.f32 %v671, 1e-05
      %v674 = vrsqrt.pop %v673
      %v675 = vmul.f32 %v672, %v674
      %v676 = vadd.f32 %v384, %v386
      %v677 = vadd.f32 %v385, %v387
      %679 = vrot.lane.b32.xlu0 %v676, 96
      %v680 = vpop.permute.xlu0 %679
      %v682 = vadd.f32 %v676, %v680
      %684 = vrot.lane.b32.xlu0 %v677, 96
      %v685 = vpop.permute.xlu0 %684
      %v687 = vadd.f32 %v677, %v685
      %689 = vrot.lane.b32.xlu0 %v682, 96
      %v690 = vpop.permute.xlu0 %689
      %693 = vrot.lane.b32.xlu0 %v687, 64
      %v694 = vpop.permute.xlu0 %693
      %696 = vrot.lane.b32.xlu0 %v687, 32
      %v697 = vpop.permute.xlu0 %696
      %vm699 = vcmask 261120
      %v700 = vsel %vm699, %v682, %v690
      %vm701 = vcmask 523264
      %v702 = vsel %vm701, %v700, %v694
      %vm703 = vcmask 785408
      %v704 = vsel %vm703, %v702, %v697
      %v706 = vlaneseq
      %v707 = vshrl.u32 %v706, 7
      %v708 = vsub.s32 0, %v707
      %v709 = vrot.slane %v382, %v708
      %v711 = vmul.f32 %v675, %v709
      %v713 = vlaneseq
      %v714 = vshrl.u32 %v713, 7
      %v715 = vsub.s32 0, %v714
      %v716 = vrot.slane %v383, %v715
      %v718 = vadd.f32 %v711, %v716
      %v719 = vmul.f32 %v704, 0.125
      %v720 = vadd.f32 %v718, %v719
      %721 = vst [vmem:[%s301] sm:$0xff] %v720
      %v722 = vld [vmem:[%s290 + $0x10] sm:$0xff]
      %v723 = vld [vmem:[%s290 + $0x18] sm:$0xff]
      %v724 = vld [vmem:[%s296 + $0x10] sm:$0xff]
      %v725 = vld [vmem:[%s296 + $0x18] sm:$0xff]
      %726 = vmatprep.subr.mxu0 0.0
      %727 = vmatpush1.msra.mxu0 %v334
      %728 = vmatprep.subr.mxu0 0.0
      %729 = vmatpush1.msra.mxu0 %v335
      %730 = vmatprep.subr.mxu0 0.0
      %731 = vmatpush1.msra.mxu0 %v336
      %732 = vmatprep.subr.mxu0 0.0
      %733 = vmatpush1.msra.mxu0 %v337
      %734 = vmatprep.subr.mxu0 0.0
      %735 = vmatpush1.msra.mxu0 %v338
      %736 = vmatprep.subr.mxu0 0.0
      %737 = vmatpush1.msra.mxu0 %v339
      %738 = vmatprep.subr.mxu0 0.0
      %739 = vmatpush1.msra.mxu0 %v340
      %740 = vmatprep.subr.mxu0 0.0
      %741 = vmatpush1.msra.mxu0 %v341
      %742 = vmatprep.subr.mxu0 0.0
      %743 = vmatpush1.msra.mxu0 %v342
      %744 = vmatprep.subr.mxu0 0.0
      %745 = vmatpush1.msra.mxu0 %v343
      %746 = vmatprep.subr.mxu0 0.0
      %747 = vmatpush1.msra.mxu0 %v344
      %748 = vmatprep.subr.mxu0 0.0
      %749 = vmatpush1.msra.mxu0 %v345
      %750 = vmatprep.subr.mxu0 0.0
      %751 = vmatpush1.msra.mxu0 %v346
      %752 = vmatprep.subr.mxu0 0.0
      %753 = vmatpush1.msra.mxu0 %v347
      %754 = vmatprep.subr.mxu0 0.0
      %755 = vmatpush1.msra.mxu0 %v348
      %756 = vmatprep.subr.mxu0 0.0
      %757 = vmatpush1.msra.mxu0 %v349
      %758 = vmatprep.subr.mxu0 0.0
      %759 = vmatpush1.msra.mxu0 %v350
      %760 = vmatprep.subr.mxu0 0.0
      %761 = vmatpush1.msra.mxu0 %v351
      %762 = vmatprep.subr.mxu0 0.0
      %763 = vmatpush1.msra.mxu0 %v352
      %764 = vmatprep.subr.mxu0 0.0
      %765 = vmatpush1.msra.mxu0 %v353
      %766 = vmatprep.subr.mxu0 0.0
      %767 = vmatpush1.msra.mxu0 %v354
      %768 = vmatprep.subr.mxu0 0.0
      %769 = vmatpush1.msra.mxu0 %v355
      %770 = vmatprep.subr.mxu0 0.0
      %771 = vmatpush1.msra.mxu0 %v356
      %772 = vmatprep.subr.mxu0 0.0
      %773 = vmatpush1.msra.mxu0 %v357
      %774 = vmatprep.subr.mxu0 0.0
      %775 = vmatpush1.msra.mxu0 %v358
      %776 = vmatprep.subr.mxu0 0.0
      %777 = vmatpush1.msra.mxu0 %v359
      %778 = vmatprep.subr.mxu0 0.0
      %779 = vmatpush1.msra.mxu0 %v360
      %780 = vmatprep.subr.mxu0 0.0
      %781 = vmatpush1.msra.mxu0 %v361
      %782 = vmatprep.subr.mxu0 0.0
      %783 = vmatpush1.msra.mxu0 %v362
      %784 = vmatprep.subr.mxu0 0.0
      %785 = vmatpush1.msra.mxu0 %v363
      %786 = vmatprep.subr.mxu0 0.0
      %787 = vmatpush1.msra.mxu0 %v364
      %788 = vmatprep.subr.mxu0 0.0
      %789 = vmatpush1.msra.mxu0 %v365
      %790 = vmatprep.mubr.f32.mxu0 %v725
      %791 = vmatmul.mubr.f32.gmra.mrb[0].mxu0 %v724
      %v792 = vpop.f32.mrb[0].mxu0
      %v793 = vadd.f32 0.0, %v792
      %v794 = vpop.f32.mrb[0].mxu0
      %795 = vdwg.mxu0
      %796 = vmatprep.subr.mxu0 0.0
      %797 = vmatpush1.msra.mxu0 %v302
      %798 = vmatprep.subr.mxu0 0.0
      %799 = vmatpush1.msra.mxu0 %v303
      %800 = vmatprep.subr.mxu0 0.0
      %801 = vmatpush1.msra.mxu0 %v304
      %802 = vmatprep.subr.mxu0 0.0
      %803 = vmatpush1.msra.mxu0 %v305
      %804 = vmatprep.subr.mxu0 0.0
      %805 = vmatpush1.msra.mxu0 %v306
      %806 = vmatprep.subr.mxu0 0.0
      %807 = vmatpush1.msra.mxu0 %v307
      %808 = vmatprep.subr.mxu0 0.0
      %809 = vmatpush1.msra.mxu0 %v308
      %810 = vmatprep.subr.mxu0 0.0
      %811 = vmatpush1.msra.mxu0 %v309
      %812 = vmatprep.subr.mxu0 0.0
      %813 = vmatpush1.msra.mxu0 %v310
      %814 = vmatprep.subr.mxu0 0.0
      %815 = vmatpush1.msra.mxu0 %v311
      %816 = vmatprep.subr.mxu0 0.0
      %817 = vmatpush1.msra.mxu0 %v312
      %818 = vmatprep.subr.mxu0 0.0
      %819 = vmatpush1.msra.mxu0 %v313
      %820 = vmatprep.subr.mxu0 0.0
      %821 = vmatpush1.msra.mxu0 %v314
      %822 = vmatprep.subr.mxu0 0.0
      %823 = vmatpush1.msra.mxu0 %v315
      %824 = vmatprep.subr.mxu0 0.0
      %825 = vmatpush1.msra.mxu0 %v316
      %826 = vmatprep.subr.mxu0 0.0
      %827 = vmatpush1.msra.mxu0 %v317
      %828 = vmatprep.subr.mxu0 0.0
      %829 = vmatpush1.msra.mxu0 %v318
      %830 = vmatprep.subr.mxu0 0.0
      %831 = vmatpush1.msra.mxu0 %v319
      %832 = vmatprep.subr.mxu0 0.0
      %833 = vmatpush1.msra.mxu0 %v320
      %834 = vmatprep.subr.mxu0 0.0
      %835 = vmatpush1.msra.mxu0 %v321
      %836 = vmatprep.subr.mxu0 0.0
      %837 = vmatpush1.msra.mxu0 %v322
      %838 = vmatprep.subr.mxu0 0.0
      %839 = vmatpush1.msra.mxu0 %v323
      %840 = vmatprep.subr.mxu0 0.0
      %841 = vmatpush1.msra.mxu0 %v324
      %842 = vmatprep.subr.mxu0 0.0
      %843 = vmatpush1.msra.mxu0 %v325
      %844 = vmatprep.subr.mxu0 0.0
      %845 = vmatpush1.msra.mxu0 %v326
      %846 = vmatprep.subr.mxu0 0.0
      %847 = vmatpush1.msra.mxu0 %v327
      %848 = vmatprep.subr.mxu0 0.0
      %849 = vmatpush1.msra.mxu0 %v328
      %850 = vmatprep.subr.mxu0 0.0
      %851 = vmatpush1.msra.mxu0 %v329
      %852 = vmatprep.subr.mxu0 0.0
      %853 = vmatpush1.msra.mxu0 %v330
      %854 = vmatprep.subr.mxu0 0.0
      %855 = vmatpush1.msra.mxu0 %v331
      %856 = vmatprep.subr.mxu0 0.0
      %857 = vmatpush1.msra.mxu0 %v332
      %858 = vmatprep.subr.mxu0 0.0
      %859 = vmatpush1.msra.mxu0 %v333
      %860 = vmatprep.mubr.f32.mxu0 %v723
      %861 = vmatmul.mubr.f32.gmra.mrb[0].mxu0 %v722
      %v862 = vpop.f32.mrb[0].mxu0
      %v863 = vadd.f32 %v793, %v862
      %v864 = vpop.f32.mrb[0].mxu0
      %865 = vdwg.mxu0
      %866 = vmatprep.subr.mxu0 0.0
      %867 = vmatpush1.msra.mxu0 %v366
      %868 = vmatprep.subr.mxu0 0.0
      %869 = vmatpush1.msra.mxu0 %v367
      %870 = vmatprep.subr.mxu0 0.0
      %871 = vmatpush1.msra.mxu0 %v368
      %872 = vmatprep.subr.mxu0 0.0
      %873 = vmatpush1.msra.mxu0 %v369
      %874 = vmatprep.subr.mxu0 0.0
      %875 = vmatpush1.msra.mxu0 %v370
      %876 = vmatprep.subr.mxu0 0.0
      %877 = vmatpush1.msra.mxu0 %v371
      %878 = vmatprep.subr.mxu0 0.0
      %879 = vmatpush1.msra.mxu0 %v372
      %880 = vmatprep.subr.mxu0 0.0
      %881 = vmatpush1.msra.mxu0 %v373
      %882 = vmatprep.subr.mxu0 0.0
      %883 = vmatpush1.msra.mxu0 %v374
      %884 = vmatprep.subr.mxu0 0.0
      %885 = vmatpush1.msra.mxu0 %v375
      %886 = vmatprep.subr.mxu0 0.0
      %887 = vmatpush1.msra.mxu0 %v376
      %888 = vmatprep.subr.mxu0 0.0
      %889 = vmatpush1.msra.mxu0 %v377
      %890 = vmatprep.subr.mxu0 0.0
      %891 = vmatpush1.msra.mxu0 %v378
      %892 = vmatprep.subr.mxu0 0.0
      %893 = vmatpush1.msra.mxu0 %v379
      %894 = vmatprep.subr.mxu0 0.0
      %895 = vmatpush1.msra.mxu0 %v380
      %896 = vmatprep.subr.mxu0 0.0
      %897 = vmatpush1.msra.mxu0 %v381
      %898 = vmatprep.subr.mxu0 0.0
      %899 = vmatpush1.msra.mxu0 0.0
      %900 = vmatprep.subr.mxu0 0.0
      %901 = vmatpush1.msra.mxu0 0.0
      %902 = vmatprep.subr.mxu0 0.0
      %903 = vmatpush1.msra.mxu0 0.0
      %904 = vmatprep.subr.mxu0 0.0
      %905 = vmatpush1.msra.mxu0 0.0
      %906 = vmatprep.subr.mxu0 0.0
      %907 = vmatpush1.msra.mxu0 0.0
      %908 = vmatprep.subr.mxu0 0.0
      %909 = vmatpush1.msra.mxu0 0.0
      %910 = vmatprep.subr.mxu0 0.0
      %911 = vmatpush1.msra.mxu0 0.0
      %912 = vmatprep.subr.mxu0 0.0
      %913 = vmatpush1.msra.mxu0 0.0
      %914 = vmatprep.subr.mxu0 0.0
      %915 = vmatpush1.msra.mxu0 0.0
      %916 = vmatprep.subr.mxu0 0.0
      %917 = vmatpush1.msra.mxu0 0.0
      %918 = vmatprep.subr.mxu0 0.0
      %919 = vmatpush1.msra.mxu0 0.0
      %920 = vmatprep.subr.mxu0 0.0
      %921 = vmatpush1.msra.mxu0 0.0
      %922 = vmatprep.subr.mxu0 0.0
      %923 = vmatpush1.msra.mxu0 0.0
      %924 = vmatprep.subr.mxu0 0.0
      %925 = vmatpush1.msra.mxu0 0.0
      %926 = vmatprep.subr.mxu0 0.0
      %927 = vmatpush1.msra.mxu0 0.0
      %928 = vmatprep.subr.mxu0 0.0
      %929 = vmatpush1.msra.mxu0 0.0
      %930 = vmatprep.mubr.f32.mxu0 0.0
      %931 = vmatmul.mubr.f32.gmra.mrb[0].mxu0 %v863
      %v932 = vpop.f32.mrb[0].mxu0
      %v933 = vadd.f32 0.0, %v932
      %v934 = vpop.f32.mrb[0].mxu0
      %935 = vdwg.mxu0
      %v936 = vmul.f32 %v863, %v863
      %937 = vmatprep.subr.mxu0 0.0
      %938 = vmatpush1.msra.mxu0 %v366
      %939 = vmatprep.subr.mxu0 0.0
      %940 = vmatpush1.msra.mxu0 %v367
      %941 = vmatprep.subr.mxu0 0.0
      %942 = vmatpush1.msra.mxu0 %v368
      %943 = vmatprep.subr.mxu0 0.0
      %944 = vmatpush1.msra.mxu0 %v369
      %945 = vmatprep.subr.mxu0 0.0
      %946 = vmatpush1.msra.mxu0 %v370
      %947 = vmatprep.subr.mxu0 0.0
      %948 = vmatpush1.msra.mxu0 %v371
      %949 = vmatprep.subr.mxu0 0.0
      %950 = vmatpush1.msra.mxu0 %v372
      %951 = vmatprep.subr.mxu0 0.0
      %952 = vmatpush1.msra.mxu0 %v373
      %953 = vmatprep.subr.mxu0 0.0
      %954 = vmatpush1.msra.mxu0 %v374
      %955 = vmatprep.subr.mxu0 0.0
      %956 = vmatpush1.msra.mxu0 %v375
      %957 = vmatprep.subr.mxu0 0.0
      %958 = vmatpush1.msra.mxu0 %v376
      %959 = vmatprep.subr.mxu0 0.0
      %960 = vmatpush1.msra.mxu0 %v377
      %961 = vmatprep.subr.mxu0 0.0
      %962 = vmatpush1.msra.mxu0 %v378
      %963 = vmatprep.subr.mxu0 0.0
      %964 = vmatpush1.msra.mxu0 %v379
      %965 = vmatprep.subr.mxu0 0.0
      %966 = vmatpush1.msra.mxu0 %v380
      %967 = vmatprep.subr.mxu0 0.0
      %968 = vmatpush1.msra.mxu0 %v381
      %969 = vmatprep.subr.mxu0 0.0
      %970 = vmatpush1.msra.mxu0 0.0
      %971 = vmatprep.subr.mxu0 0.0
      %972 = vmatpush1.msra.mxu0 0.0
      %973 = vmatprep.subr.mxu0 0.0
      %974 = vmatpush1.msra.mxu0 0.0
      %975 = vmatprep.subr.mxu0 0.0
      %976 = vmatpush1.msra.mxu0 0.0
      %977 = vmatprep.subr.mxu0 0.0
      %978 = vmatpush1.msra.mxu0 0.0
      %979 = vmatprep.subr.mxu0 0.0
      %980 = vmatpush1.msra.mxu0 0.0
      %981 = vmatprep.subr.mxu0 0.0
      %982 = vmatpush1.msra.mxu0 0.0
      %983 = vmatprep.subr.mxu0 0.0
      %984 = vmatpush1.msra.mxu0 0.0
      %985 = vmatprep.subr.mxu0 0.0
      %986 = vmatpush1.msra.mxu0 0.0
      %987 = vmatprep.subr.mxu0 0.0
      %988 = vmatpush1.msra.mxu0 0.0
      %989 = vmatprep.subr.mxu0 0.0
      %990 = vmatpush1.msra.mxu0 0.0
      %991 = vmatprep.subr.mxu0 0.0
      %992 = vmatpush1.msra.mxu0 0.0
      %993 = vmatprep.subr.mxu0 0.0
      %994 = vmatpush1.msra.mxu0 0.0
      %995 = vmatprep.subr.mxu0 0.0
      %996 = vmatpush1.msra.mxu0 0.0
      %997 = vmatprep.subr.mxu0 0.0
      %998 = vmatpush1.msra.mxu0 0.0
      %999 = vmatprep.subr.mxu0 0.0
      %1000 = vmatpush1.msra.mxu0 0.0
      %1001 = vmatprep.mubr.f32.mxu0 0.0
      %1002 = vmatmul.mubr.f32.gmra.mrb[0].mxu0 %v936
      %v1003 = vpop.f32.mrb[0].mxu0
      %v1004 = vadd.f32 0.0, %v1003
      %v1005 = vpop.f32.mrb[0].mxu0
      %1006 = vdwg.mxu0
      %v1007 = vmul.f32 %v933, %v933
      %v1008 = vsub.f32 %v1004, %v1007
      %v1009 = vmax.f32 %v1008, 0.0
      %v1010 = vsub.f32 %v863, %v933
      %v1011 = vadd.f32 %v1009, 1e-05
      %v1012 = vrsqrt.pop %v1011
      %v1013 = vmul.f32 %v1010, %v1012
      %v1014 = vadd.f32 %v722, %v724
      %v1015 = vadd.f32 %v723, %v725
      %1017 = vrot.lane.b32.xlu0 %v1014, 96
      %v1018 = vpop.permute.xlu0 %1017
      %v1020 = vadd.f32 %v1014, %v1018
      %1022 = vrot.lane.b32.xlu0 %v1015, 96
      %v1023 = vpop.permute.xlu0 %1022
      %v1025 = vadd.f32 %v1015, %v1023
      %1027 = vrot.lane.b32.xlu0 %v1020, 96
      %v1028 = vpop.permute.xlu0 %1027
      %1031 = vrot.lane.b32.xlu0 %v1025, 64
      %v1032 = vpop.permute.xlu0 %1031
      %1034 = vrot.lane.b32.xlu0 %v1025, 32
      %v1035 = vpop.permute.xlu0 %1034
      %v1037 = vsel %vm699, %v1020, %v1028
      %v1038 = vsel %vm701, %v1037, %v1032
      %v1039 = vsel %vm703, %v1038, %v1035
      %v1040 = vmul.f32 %v1013, %v709
      %v1041 = vadd.f32 %v1040, %v716
      %v1042 = vmul.f32 %v1039, 0.125
      %v1043 = vadd.f32 %v1041, %v1042
      %1044 = vst [vmem:[%s301 + $0x8] sm:$0xff] %v1043
      %p1045 = scmp.lt.s32.totalorder %s18, 1
      %s1046 = scalar_select %p1045, %s18, 1
      %s1047 = smul.addr %s1046, 2
      %s1048 = smul.addr %s1047, 8
      %s1049 = scalar_lea.vmem %s7, %s1048
      // Predicated region
      $region49: #{_forward.1} parent=47 // pred_check
        %p1050 = pneg %p193
      $region50: #{_forward.1} parent=47 // pred_check_branch
        %1052 = sbr.rel (%p1050) target = $region52
      $region51: #{_forward.1} parent=47 // pred_region
        _
      $region52: #{_forward.1} parent=47 // pred_fallthru
        _
    $region48: #{_forward.1} parent=5 // pred_fallthru
      _
    %p1053 = scmp.le.s32.totalorder 2, %s13
    // Predicated region
    $region53: #{_forward.1} parent=5 // pred_check
      %p1054 = pneg %p1053
    $region54: #{_forward.1} parent=5 // pred_check_branch
      %1056 = sbr.rel (%p1054) target = $region56
    $region55: #{_forward.1} parent=5 // pred_region
      %s1057 = ssub.s32 %s13, 2
      // Predicated region
      $region57: #{_forward.1} parent=55 // pred_check
        %p1058 = pneg %p199
      $region58: #{_forward.1} parent=55 // pred_check_branch
        %1060 = sbr.rel (%p1058) target = $region60
      $region59: #{_forward.1} parent=55 // pred_region
        %p1061 = scmp.lt.s32.totalorder %s19, 1
        %s1062 = scalar_select %p1061, %s19, 1
        %s1063 = smul.addr %s1062, 2
        %s1064 = smul.addr %s1063, 8
        %s1065 = scalar_lea.vmem %s7, %s1064
      $region60: #{_forward.1} parent=55 // pred_fallthru
        _
    $region56: #{_forward.1} parent=5 // pred_fallthru
      _
  $region6: #{_forward.1} parent=0 // loop_footer
    %s17 = sadd.s32 1, %s13
  $region7: #{_forward.1} parent=0 // loop_footer_branch
    %12 = sbr.rel target = $region3
  $region8: #{_forward.1} parent=0 // loop_exit
    _

</llo_original>
